<compile_context>
chip_gen: v6e
topology: v6e:2x2x1
jax: 0.10.0
libtpu: 0.0.40
codegen_flags: <defaults>
</compile_context>

<pallas_src>
import functools

import jax
import jax.numpy as jnp
from jax.experimental import pallas as pl
from jax.experimental.pallas import tpu as pltpu

_SUBLANE_BF16 = 16     # bf16 packs 16 rows per (sublane x lane) vreg tile
_MAX_BATCH_TILE = 256  # fills the 2x256^2 MXU on v6e/v7x; >=128 also fine on v5e


def _round_up(n: int, m: int) -> int:
    return ((n + m - 1) // m) * m


def _fused_mlp_kernel(*refs, num_layers: int):
    """One batch tile of the fused MLP; all weights are VMEM-resident.

    refs layout: x_ref, (w_ref, b_ref) * num_layers, o_ref
      x_ref: (TM, D0) bf16
      w_ref[i]: (Din_i, Dout_i) bf16  (pre-transposed -> feeds MXU directly)
      b_ref[i]: (1, Dout_i) f32
      o_ref: (TM, D_last) f32
    """
    x_ref = refs[0]
    o_ref = refs[-1]
    h = x_ref[...]                                   # bf16 activations
    for i in range(num_layers):
        w_ref = refs[1 + 2 * i]
        b_ref = refs[2 + 2 * i]
        # MXU matmul with f32 accumulation; bias add + ReLU stay in f32.
        acc = jnp.dot(h, w_ref[...], preferred_element_type=jnp.float32) + b_ref[...]
        if i < num_layers - 1:                       # ReLU on all but the last layer
            h = jnp.maximum(acc, 0.0).astype(w_ref.dtype)   # back to bf16 for next MXU pass
        else:
            h = acc
    o_ref[...] = h.astype(o_ref.dtype)


def init_mlp_params(key, input_size, hidden_size, num_classes, hidden_count):
    """Mirror of MLP.__init__: weights set by torch.nn.init.ones_, biases keep the
    default nn.Linear init U(-1/sqrt(fan_in), 1/sqrt(fan_in)).
    Stored PyTorch-style: w is (out_features, in_features), b is (out_features,)."""
    params = []
    dims = ([(input_size, hidden_size)]
            + [(hidden_size, hidden_size)] * hidden_count
            + [(hidden_size, num_classes)])
    for (fan_in, fan_out) in dims:
        key, bk = jax.random.split(key)
        w = jnp.ones((fan_out, fan_in), dtype=jnp.float32)           # initializer = ones_
        bound = 1.0 / jnp.sqrt(jnp.float32(fan_in))
        b = jax.random.uniform(bk, (fan_out,), jnp.float32, minval=-bound, maxval=bound)
        params.append((w, b))
    return params


def init_random_params(key, input_size, hidden_size, num_classes, hidden_count):
    """Random-weight variant (same shapes) to actually exercise matmul indexing."""
    params = []
    dims = ([(input_size, hidden_size)]
            + [(hidden_size, hidden_size)] * hidden_count
            + [(hidden_size, num_classes)])
    for (fan_in, fan_out) in dims:
        key, wk, bk = jax.random.split(key, 3)
        bound = 1.0 / jnp.sqrt(jnp.float32(fan_in))
        w = jax.random.uniform(wk, (fan_out, fan_in), jnp.float32, minval=-bound, maxval=bound)
        b = jax.random.uniform(bk, (fan_out,), jnp.float32, minval=-bound, maxval=bound)
        params.append((w, b))
    return params


def prepare_kernel_params(params):
    """One-time layout plumbing: transpose weights to (Din, Dout) so the kernel feeds
    the MXU directly (no in-kernel XLU transpose), cast weights to bf16 (MXU fast
    path, half the DMA/VMEM), keep biases f32 as (1, Dout). No feature padding."""
    prepared = []
    for (w, b) in params:
        wt = jnp.asarray(w.T, dtype=jnp.bfloat16)          # (Din, Dout)
        bp = jnp.asarray(b, dtype=jnp.float32).reshape(1, -1)
        prepared.append((wt, bp))
    return prepared


def mlp_forward(x: jax.Array, kernel_params) -> jax.Array:
    """Forward pass identical to MLP.forward, as one fused, batch-tiled Pallas kernel."""
    B, d_in = x.shape
    num_layers = len(kernel_params)
    d_out = kernel_params[-1][0].shape[1]

    # Batch tile: multiple of 16 sublanes (bf16 activations); pad batch up to it.
    tm = min(_MAX_BATCH_TILE, _round_up(B, _SUBLANE_BF16))
    b_pad = _round_up(B, tm)
    x_pad = jnp.zeros((b_pad, d_in), jnp.bfloat16).at[:B, :].set(x.astype(jnp.bfloat16))

    kernel_args = [x_pad]
    in_specs = [pl.BlockSpec((tm, d_in), lambda i: (i, 0))]       # batch-tiled activations
    flops = 0
    bytes_accessed = x_pad.size * x_pad.dtype.itemsize
    weight_bytes = 0
    for (wt, bp) in kernel_params:
        kernel_args += [wt, bp]
        # Constant index_map -> weights/biases stay VMEM-resident across batch tiles.
        in_specs += [pl.BlockSpec(wt.shape, lambda i: (0, 0)),
                     pl.BlockSpec(bp.shape, lambda i: (0, 0))]
        flops += 2 * b_pad * wt.shape[0] * wt.shape[1]
        weight_bytes += wt.size * wt.dtype.itemsize + bp.size * bp.dtype.itemsize
    bytes_accessed += weight_bytes + b_pad * d_out * 4

    # VMEM budget: double-buffered x/out tiles + (possibly double-buffered) weights
    # + margin; capped at v7x's 64 MiB physical so the plan is valid everywhere.
    block_bytes = tm * d_in * 2 + tm * d_out * 4 + weight_bytes
    vmem_limit = int(min(64 << 20, 2 * block_bytes + (2 << 20)))

    out = pl.pallas_call(
        functools.partial(_fused_mlp_kernel, num_layers=num_layers),
        out_shape=jax.ShapeDtypeStruct((b_pad, d_out), jnp.float32),
        grid=(b_pad // tm,),
        in_specs=in_specs,
        out_specs=pl.BlockSpec((tm, d_out), lambda i: (i, 0)),
        compiler_params=pltpu.CompilerParams(
            dimension_semantics=("parallel",),        # megacore sharding on v7x
            vmem_limit_bytes=vmem_limit),
        cost_estimate=pl.CostEstimate(
            flops=flops, transcendentals=0, bytes_accessed=bytes_accessed),
    )(*kernel_args)
    return out[:B]


def mlp_reference_f32(x, params):
    """Pure f32 reference matching the PyTorch module exactly."""
    n = len(params)
    h = x
    for i, (w, b) in enumerate(params):
        h = h @ w.T + b
        if i < n - 1:
            h = jnp.maximum(h, 0.0)
    return h


def mlp_reference_mixed(x, params):
    """Reference mirroring the kernel's precision (bf16 operands, f32 accumulation,
    bias/ReLU in f32) -- tight-tolerance check of indexing / transposition / fusion."""
    n = len(params)
    h = x.astype(jnp.bfloat16)
    for i, (w, b) in enumerate(params):
        acc = jnp.dot(h, w.T.astype(jnp.bfloat16),
                      preferred_element_type=jnp.float32) + b
        if i < n - 1:
            h = jnp.maximum(acc, 0.0).astype(jnp.bfloat16)
        else:
            h = acc
    return h


if __name__ == "__main__":
    key = jax.random.PRNGKey(0)
    batch, input_size, hidden_size, num_classes, hidden_count = 8, 32, 32, 16, 2

    kx, kp, kw = jax.random.split(key, 3)
    x = jax.random.normal(kx, (batch, input_size), dtype=jnp.float32)

    fwd = jax.jit(mlp_forward)

    # 1) Spec-faithful params (ones_ weights, default nn.Linear bias init).
    params = init_mlp_params(kp, input_size, hidden_size, num_classes, hidden_count)
    out = jax.block_until_ready(fwd(x, prepare_kernel_params(params)))
    assert out.shape == (batch, num_classes)
    assert jnp.allclose(out, mlp_reference_mixed(x, params), rtol=1e-3, atol=1e-2), \
        "mismatch vs precision-mirrored reference (ones_ weights)"
    ref32 = mlp_reference_f32(x, params)
    scale = jnp.maximum(jnp.max(jnp.abs(ref32)), 1.0)
    assert jnp.max(jnp.abs(out - ref32)) / scale < 0.15, \
        "bf16 compute drifted too far from f32 module semantics (ones_ weights)"

    # 2) Random weights: actually exercises matmul indexing/transposition.
    rparams = init_random_params(kw, input_size, hidden_size, num_classes, hidden_count)
    rout = jax.block_until_ready(fwd(x, prepare_kernel_params(rparams)))
    assert jnp.allclose(rout, mlp_reference_mixed(x, rparams), rtol=1e-3, atol=1e-2), \
        "mismatch vs precision-mirrored reference (random weights)"
    rref32 = mlp_reference_f32(x, rparams)
    rscale = jnp.maximum(jnp.max(jnp.abs(rref32)), 1.0)
    assert jnp.max(jnp.abs(rout - rref32)) / rscale < 0.15, \
        "bf16 compute drifted too far from f32 module semantics (random weights)"

    print("KERNEL_OK")
</pallas_src>

<mosaic_0001>
module attributes {stable_mosaic.version = 11 : i64} {
  func.func @_fused_mlp_kernel(%arg0: i32, %arg1: memref<16x32xbf16, #tpu.memory_space<vmem>>, %arg2: memref<32x32xbf16, #tpu.memory_space<vmem>>, %arg3: memref<1x32xf32, #tpu.memory_space<vmem>>, %arg4: memref<32x32xbf16, #tpu.memory_space<vmem>>, %arg5: memref<1x32xf32, #tpu.memory_space<vmem>>, %arg6: memref<32x32xbf16, #tpu.memory_space<vmem>>, %arg7: memref<1x32xf32, #tpu.memory_space<vmem>>, %arg8: memref<32x16xbf16, #tpu.memory_space<vmem>>, %arg9: memref<1x16xf32, #tpu.memory_space<vmem>>, %arg10: memref<16x16xf32, #tpu.memory_space<vmem>>) attributes {dimension_semantics = [#tpu.dimension_semantics<parallel>], iteration_bounds = array<i64: 1>, scalar_prefetch = 0 : i64, scratch_operands = 0 : i64, tpu.core_type = #tpu.core_type<tc>, window_params = [{transform_indices = @transform_0, window_bounds = array<i64: 16, 32>}, {pipeline_mode = #tpu.pipeline_mode<synchronous>, transform_indices = @transform_1, window_bounds = array<i64: 32, 32>}, {pipeline_mode = #tpu.pipeline_mode<synchronous>, transform_indices = @transform_2, window_bounds = array<i64: 1, 32>}, {pipeline_mode = #tpu.pipeline_mode<synchronous>, transform_indices = @transform_3, window_bounds = array<i64: 32, 32>}, {pipeline_mode = #tpu.pipeline_mode<synchronous>, transform_indices = @transform_4, window_bounds = array<i64: 1, 32>}, {pipeline_mode = #tpu.pipeline_mode<synchronous>, transform_indices = @transform_5, window_bounds = array<i64: 32, 32>}, {pipeline_mode = #tpu.pipeline_mode<synchronous>, transform_indices = @transform_6, window_bounds = array<i64: 1, 32>}, {pipeline_mode = #tpu.pipeline_mode<synchronous>, transform_indices = @transform_7, window_bounds = array<i64: 32, 16>}, {pipeline_mode = #tpu.pipeline_mode<synchronous>, transform_indices = @transform_8, window_bounds = array<i64: 1, 16>}, {transform_indices = @transform_9, window_bounds = array<i64: 16, 16>}]} {
    %c0 = arith.constant 0 : index
    %c0_0 = arith.constant 0 : index
    %0 = vector.load %arg1[%c0, %c0_0] : memref<16x32xbf16, #tpu.memory_space<vmem>>, vector<16x32xbf16>
    %c0_1 = arith.constant 0 : index
    %c0_2 = arith.constant 0 : index
    %1 = vector.load %arg2[%c0_1, %c0_2] : memref<32x32xbf16, #tpu.memory_space<vmem>>, vector<32x32xbf16>
    %cst = arith.constant dense<0.000000e+00> : vector<16x32xf32>
    %2 = tpu.matmul %0, %1, %cst {dimension_numbers = #tpu.dot_dimension_numbers<[1], [0], [0], [1], [0, 0, 1, 1], [], []>} : vector<16x32xbf16>, vector<32x32xbf16>, vector<16x32xf32> -> vector<16x32xf32>
    %c0_3 = arith.constant 0 : index
    %c0_4 = arith.constant 0 : index
    %3 = vector.load %arg3[%c0_3, %c0_4] : memref<1x32xf32, #tpu.memory_space<vmem>>, vector<1x32xf32>
    %4 = vector.broadcast %3 : vector<1x32xf32> to vector<16x32xf32>
    %5 = arith.addf %2, %4 : vector<16x32xf32>
    %cst_5 = arith.constant 0.000000e+00 : f32
    %6 = vector.broadcast %cst_5 : f32 to vector<16x32xf32>
    %7 = arith.maximumf %5, %6 : vector<16x32xf32>
    %8 = arith.truncf %7 : vector<16x32xf32> to vector<16x32xbf16>
    %c0_6 = arith.constant 0 : index
    %c0_7 = arith.constant 0 : index
    %9 = vector.load %arg4[%c0_6, %c0_7] : memref<32x32xbf16, #tpu.memory_space<vmem>>, vector<32x32xbf16>
    %cst_8 = arith.constant dense<0.000000e+00> : vector<16x32xf32>
    %10 = tpu.matmul %8, %9, %cst_8 {dimension_numbers = #tpu.dot_dimension_numbers<[1], [0], [0], [1], [0, 0, 1, 1], [], []>} : vector<16x32xbf16>, vector<32x32xbf16>, vector<16x32xf32> -> vector<16x32xf32>
    %c0_9 = arith.constant 0 : index
    %c0_10 = arith.constant 0 : index
    %11 = vector.load %arg5[%c0_9, %c0_10] : memref<1x32xf32, #tpu.memory_space<vmem>>, vector<1x32xf32>
    %12 = vector.broadcast %11 : vector<1x32xf32> to vector<16x32xf32>
    %13 = arith.addf %10, %12 : vector<16x32xf32>
    %cst_11 = arith.constant 0.000000e+00 : f32
    %14 = vector.broadcast %cst_11 : f32 to vector<16x32xf32>
    %15 = arith.maximumf %13, %14 : vector<16x32xf32>
    %16 = arith.truncf %15 : vector<16x32xf32> to vector<16x32xbf16>
    %c0_12 = arith.constant 0 : index
    %c0_13 = arith.constant 0 : index
    %17 = vector.load %arg6[%c0_12, %c0_13] : memref<32x32xbf16, #tpu.memory_space<vmem>>, vector<32x32xbf16>
    %cst_14 = arith.constant dense<0.000000e+00> : vector<16x32xf32>
    %18 = tpu.matmul %16, %17, %cst_14 {dimension_numbers = #tpu.dot_dimension_numbers<[1], [0], [0], [1], [0, 0, 1, 1], [], []>} : vector<16x32xbf16>, vector<32x32xbf16>, vector<16x32xf32> -> vector<16x32xf32>
    %c0_15 = arith.constant 0 : index
    %c0_16 = arith.constant 0 : index
    %19 = vector.load %arg7[%c0_15, %c0_16] : memref<1x32xf32, #tpu.memory_space<vmem>>, vector<1x32xf32>
    %20 = vector.broadcast %19 : vector<1x32xf32> to vector<16x32xf32>
    %21 = arith.addf %18, %20 : vector<16x32xf32>
    %cst_17 = arith.constant 0.000000e+00 : f32
    %22 = vector.broadcast %cst_17 : f32 to vector<16x32xf32>
    %23 = arith.maximumf %21, %22 : vector<16x32xf32>
    %24 = arith.truncf %23 : vector<16x32xf32> to vector<16x32xbf16>
    %c0_18 = arith.constant 0 : index
    %c0_19 = arith.constant 0 : index
    %25 = vector.load %arg8[%c0_18, %c0_19] : memref<32x16xbf16, #tpu.memory_space<vmem>>, vector<32x16xbf16>
    %cst_20 = arith.constant dense<0.000000e+00> : vector<16x16xf32>
    %26 = tpu.matmul %24, %25, %cst_20 {dimension_numbers = #tpu.dot_dimension_numbers<[1], [0], [0], [1], [0, 0, 1, 1], [], []>} : vector<16x32xbf16>, vector<32x16xbf16>, vector<16x16xf32> -> vector<16x16xf32>
    %c0_21 = arith.constant 0 : index
    %c0_22 = arith.constant 0 : index
    %27 = vector.load %arg9[%c0_21, %c0_22] : memref<1x16xf32, #tpu.memory_space<vmem>>, vector<1x16xf32>
    %28 = vector.broadcast %27 : vector<1x16xf32> to vector<16x16xf32>
    %29 = arith.addf %26, %28 : vector<16x16xf32>
    %c0_23 = arith.constant 0 : index
    %c0_24 = arith.constant 0 : index
    %30 = vector.load %arg10[%c0_23, %c0_24] : memref<16x16xf32, #tpu.memory_space<vmem>>, vector<16x16xf32>
    tpu.vector_store %arg10[%c0_23, %c0_24], %29 {strides = array<i32>} : memref<16x16xf32, #tpu.memory_space<vmem>>, vector<16x16xf32>,
    return
  }
  func.func @transform_0(%arg0: i32) -> (i32, i32) {
    %c0_i32 = arith.constant 0 : i32
    %c0_i32_0 = arith.constant 0 : i32
    return %arg0, %c0_i32 : i32, i32
  }
  func.func @transform_1(%arg0: i32) -> (i32, i32) {
    %c0_i32 = arith.constant 0 : i32
    %c0_i32_0 = arith.constant 0 : i32
    %c0_i32_1 = arith.constant 0 : i32
    return %c0_i32, %c0_i32_0 : i32, i32
  }
  func.func @transform_2(%arg0: i32) -> (i32, i32) {
    %c0_i32 = arith.constant 0 : i32
    %c0_i32_0 = arith.constant 0 : i32
    %c0_i32_1 = arith.constant 0 : i32
    return %c0_i32, %c0_i32_0 : i32, i32
  }
  func.func @transform_3(%arg0: i32) -> (i32, i32) {
    %c0_i32 = arith.constant 0 : i32
    %c0_i32_0 = arith.constant 0 : i32
    %c0_i32_1 = arith.constant 0 : i32
    return %c0_i32, %c0_i32_0 : i32, i32
  }
  func.func @transform_4(%arg0: i32) -> (i32, i32) {
    %c0_i32 = arith.constant 0 : i32
    %c0_i32_0 = arith.constant 0 : i32
    %c0_i32_1 = arith.constant 0 : i32
    return %c0_i32, %c0_i32_0 : i32, i32
  }
  func.func @transform_5(%arg0: i32) -> (i32, i32) {
    %c0_i32 = arith.constant 0 : i32
    %c0_i32_0 = arith.constant 0 : i32
    %c0_i32_1 = arith.constant 0 : i32
    return %c0_i32, %c0_i32_0 : i32, i32
  }
  func.func @transform_6(%arg0: i32) -> (i32, i32) {
    %c0_i32 = arith.constant 0 : i32
    %c0_i32_0 = arith.constant 0 : i32
    %c0_i32_1 = arith.constant 0 : i32
    return %c0_i32, %c0_i32_0 : i32, i32
  }
  func.func @transform_7(%arg0: i32) -> (i32, i32) {
    %c0_i32 = arith.constant 0 : i32
    %c0_i32_0 = arith.constant 0 : i32
    %c0_i32_1 = arith.constant 0 : i32
    return %c0_i32, %c0_i32_0 : i32, i32
  }
  func.func @transform_8(%arg0: i32) -> (i32, i32) {
    %c0_i32 = arith.constant 0 : i32
    %c0_i32_0 = arith.constant 0 : i32
    %c0_i32_1 = arith.constant 0 : i32
    return %c0_i32, %c0_i32_0 : i32, i32
  }
  func.func @transform_9(%arg0: i32) -> (i32, i32) {
    %c0_i32 = arith.constant 0 : i32
    %c0_i32_0 = arith.constant 0 : i32
    return %arg0, %c0_i32 : i32, i32
  }
}

</mosaic_0001>

<llo_original>
// kernel: mlp_forward.1
$region0: #{mlp_forward.1}
  #allocation0 [shape = 'u32[]', space=smem, size = 0x4, offset = 0x4, fixed_abs, tag = 'smem constant byte address 0x4 - core index']
  #allocation1 [shape = 'u32[144,128]{1,0:T(1,128)}', space=vmem, size = 0x12000, scoped, tag = 'internal scratch']
  %s0 = inlined_call_operand.vmem [shape: bf16[16,32], index: 0, kind: input, shape index: {}]
  %s1 = inlined_call_operand.vmem [shape: bf16[32,32], index: 1, kind: input, shape index: {}]
  %s2 = inlined_call_operand.hbm [shape: f32[1,32], index: 2, kind: input, shape index: {}]
  %s3 = inlined_call_operand.vmem [shape: bf16[32,32], index: 3, kind: input, shape index: {}]
  %s4 = inlined_call_operand.hbm [shape: f32[1,32], index: 4, kind: input, shape index: {}]
  %s5 = inlined_call_operand.vmem [shape: bf16[32,32], index: 5, kind: input, shape index: {}]
  %s6 = inlined_call_operand.vmem [shape: f32[1,32], index: 6, kind: input, shape index: {}]
  %s7 = inlined_call_operand.vmem [shape: bf16[32,16], index: 7, kind: input, shape index: {}]
  %s8 = inlined_call_operand.vmem [shape: f32[1,16], index: 8, kind: input, shape index: {}]
  %s9 = inlined_call_operand.vmem [shape: f32[16,16], index: 9, kind: output, shape index: {}]
  %s10 = sld [smem:[#allocation0]]
  $region54: #{mlp_forward.1} parent=0
    _
  %s12 = ssub.s32 1, %s10
  %s13 = scalar_select 0, %s12, %s10
  $region1: #{mlp_forward.1} parent=0
    #allocation2 [shape = 'u8[512]{0}', space=vmem, size = 0x400, scoped, tag = 'input window, operand 2, single buffered']
    #allocation3 [shape = 's32[1]{0}', space=sflag, size = 0x4, scoped, tag = 'scoped memory for mlp_forward.1']
    #allocation4 [shape = 'u8[512]{0}', space=vmem, size = 0x400, scoped, tag = 'input window, operand 4, single buffered']
    #allocation5 [shape = 's32[1]{0}', space=sflag, size = 0x4, scoped, tag = 'scoped memory for mlp_forward.1']
    %14 = vsyncpa [#allocation3], 0
    %15 = vsyncpa [#allocation5], 0
    // Predicated region
    $region2: #{mlp_forward.1} parent=1 // pred_check
      _
    $region3: #{mlp_forward.1} parent=1 // pred_check_branch
      %17 = sbr.rel (0) target = $region5
    $region4: #{mlp_forward.1} parent=1 // pred_region
      _
    $region5: #{mlp_forward.1} parent=1 // pred_fallthru
      _
    // Predicated region
    $region6: #{mlp_forward.1} parent=1 // pred_check
      _
    $region7: #{mlp_forward.1} parent=1 // pred_check_branch
      %19 = sbr.rel (0) target = $region9
    $region8: #{mlp_forward.1} parent=1 // pred_region
      _
    $region9: #{mlp_forward.1} parent=1 // pred_fallthru
      _
    // Predicated region
    $region10: #{mlp_forward.1} parent=1 // pred_check
      _
    $region11: #{mlp_forward.1} parent=1 // pred_check_branch
      %21 = sbr.rel (0) target = $region13
    $region12: #{mlp_forward.1} parent=1 // pred_region
      %s23 = ssub.s32 16, 16
      %24 = vsyncadd [#allocation3], %s23
      %s26 = sshll.u32 [#allocation2], 4
      %s27 = int_to_ptr.vmem [resolvable:$true] %s26
      %29 = dma.hbm_to_vmem [thread:$0]  %s2, 16, %s27, [#allocation3]
    $region13: #{mlp_forward.1} parent=1 // pred_fallthru
      _
    // Predicated region
    $region14: #{mlp_forward.1} parent=1 // pred_check
      _
    $region15: #{mlp_forward.1} parent=1 // pred_check_branch
      %31 = sbr.rel (0) target = $region17
    $region16: #{mlp_forward.1} parent=1 // pred_region
      _
    $region17: #{mlp_forward.1} parent=1 // pred_fallthru
      _
    // Predicated region
    $region18: #{mlp_forward.1} parent=1 // pred_check
      _
    $region19: #{mlp_forward.1} parent=1 // pred_check_branch
      %33 = sbr.rel (0) target = $region21
    $region20: #{mlp_forward.1} parent=1 // pred_region
      %s35 = ssub.s32 16, 16
      %36 = vsyncadd [#allocation5], %s35
      %s38 = sshll.u32 [#allocation4], 4
      %s39 = int_to_ptr.vmem [resolvable:$true] %s38
      %41 = dma.hbm_to_vmem [thread:$0]  %s4, 16, %s39, [#allocation5]
    $region21: #{mlp_forward.1} parent=1 // pred_fallthru
      _
    // Predicated region
    $region22: #{mlp_forward.1} parent=1 // pred_check
      _
    $region23: #{mlp_forward.1} parent=1 // pred_check_branch
      %43 = sbr.rel (0) target = $region25
    $region24: #{mlp_forward.1} parent=1 // pred_region
      _
    $region25: #{mlp_forward.1} parent=1 // pred_fallthru
      _
    // Predicated region
    $region26: #{mlp_forward.1} parent=1 // pred_check
      _
    $region27: #{mlp_forward.1} parent=1 // pred_check_branch
      %45 = sbr.rel (0) target = $region29
    $region28: #{mlp_forward.1} parent=1 // pred_region
      _
    $region29: #{mlp_forward.1} parent=1 // pred_fallthru
      _
    // Predicated region
    $region30: #{mlp_forward.1} parent=1 // pred_check
      _
    $region31: #{mlp_forward.1} parent=1 // pred_check_branch
      %47 = sbr.rel (0) target = $region33
    $region32: #{mlp_forward.1} parent=1 // pred_region
      _
    $region33: #{mlp_forward.1} parent=1 // pred_fallthru
      _
    // Predicated region
    $region34: #{mlp_forward.1} parent=1 // pred_check
      _
    $region35: #{mlp_forward.1} parent=1 // pred_check_branch
      %49 = sbr.rel (0) target = $region37
    $region36: #{mlp_forward.1} parent=1 // pred_region
      _
    $region37: #{mlp_forward.1} parent=1 // pred_fallthru
      _
    // Predicated region
    $region38: #{mlp_forward.1} parent=1 // pred_check
      _
    $region39: #{mlp_forward.1} parent=1 // pred_check_branch
      %51 = sbr.rel (0) target = $region41
    $region40: #{mlp_forward.1} parent=1 // pred_region
      %52 = dma.done [#allocation3], 16
    $region41: #{mlp_forward.1} parent=1 // pred_fallthru
      _
    // Predicated region
    $region42: #{mlp_forward.1} parent=1 // pred_check
      _
    $region43: #{mlp_forward.1} parent=1 // pred_check_branch
      %54 = sbr.rel (0) target = $region45
    $region44: #{mlp_forward.1} parent=1 // pred_region
      %55 = dma.done [#allocation5], 16
    $region45: #{mlp_forward.1} parent=1 // pred_fallthru
      _
    %v57 = vld [vmem:[%s0] sm:$0xf]
    %v58 = vld [vmem:[%s0 + $0x4] sm:$0xf]
    %v59 = vld [vmem:[%s1] sm:$0xf]
    %v60 = vld [vmem:[%s1 + $0x4] sm:$0xf]
    %v61 = vld [vmem:[%s1 + $0x8] sm:$0xf]
    %v62 = vld [vmem:[%s1 + $0xc] sm:$0xf]
    %v63 = vld [vmem:[#allocation2] sm:$0x1]
    %v65 = vlaneseq
    %v66 = vshrl.u32 %v65, 7
    %v67 = vsub.s32 0, %v66
    %v68 = vrot.slane %v63, %v67
    %v72 = vunpack.c.l.b16 %v57
    %v73 = vunpack.c.l.b16 %v58
    %v74 = vpack.c.b16 %v73, %v72
    %v79 = vunpack.c.l.b16 %v59
    %v80 = vunpack.c.l.b16 %v60
    %v81 = vunpack.c.l.b16 %v61
    %v82 = vunpack.c.l.b16 %v62
    %v83 = vpack.c.b16 %v80, %v79
    %v84 = vpack.c.b16 %v82, %v81
    %vm87 = vcmask 261120
    %v89 = vsel %vm87, %v74, 0
    %91 = vmatprep.subr.bf16.mxu0 0
    %92 = vmatpush1.bf16.msra.mxu0 0
    %93 = vmatprep.subr.bf16.mxu0 0
    %94 = vmatpush1.bf16.msra.mxu0 0
    %95 = vmatprep.subr.bf16.mxu0 0
    %96 = vmatpush1.bf16.msra.mxu0 0
    %97 = vmatprep.subr.bf16.mxu0 0
    %98 = vmatpush1.bf16.msra.mxu0 0
    %99 = vmatprep.subr.bf16.mxu0 0
    %100 = vmatpush1.bf16.msra.mxu0 0
    %101 = vmatprep.subr.bf16.mxu0 0
    %102 = vmatpush1.bf16.msra.mxu0 0
    %103 = vmatprep.subr.bf16.mxu0 0
    %104 = vmatpush1.bf16.msra.mxu0 %v84
    %105 = vmatprep.subr.bf16.mxu0 0
    %106 = vmatpush1.bf16.msra.mxu0 %v83
    %107 = vmatprep.subr.bf16.mxu0 0
    %108 = vmatpush2.bf16.msra.mxu0 0
    %109 = vmatprep.subr.bf16.mxu0 0
    %110 = vmatpush2.bf16.msra.mxu0 0
    %111 = vmatprep.subr.bf16.mxu0 0
    %112 = vmatpush2.bf16.msra.mxu0 0
    %113 = vmatprep.subr.bf16.mxu0 0
    %114 = vmatpush2.bf16.msra.mxu0 0
    %115 = vmatprep.subr.bf16.mxu0 0
    %116 = vmatpush2.bf16.msra.mxu0 0
    %117 = vmatprep.subr.bf16.mxu0 0
    %118 = vmatpush2.bf16.msra.mxu0 0
    %119 = vmatprep.subr.bf16.mxu0 0
    %120 = vmatpush2.bf16.msra.mxu0 0
    %121 = vmatprep.subr.bf16.mxu0 0
    %122 = vmatpush2.bf16.msra.mxu0 0
    %123 = vmatprep.mubr.bf16.mxu0 0
    %124 = vmatmul.mubr.bf16.gmra.mxu0 %v89
    %v125 = vpop.f32.mrf.mxu0
    %v126 = vadd.f32 %v68, %v125
    %v127 = vpop.f32.mrf.mxu0
    %v128 = vpop.f32.mrf.mxu0
    %v129 = vadd.f32 %v68, %v128
    %v130 = vpop.f32.mrf.mxu0
    %131 = vdwg.mxu0
    %v132 = vmax.f32 %v126, 0.0
    %v133 = vmax.f32 %v129, 0.0
    %v134 = vpack.c.bf16 %v133, %v132
    %v135 = vld [vmem:[%s3] sm:$0xf]
    %v136 = vld [vmem:[%s3 + $0x4] sm:$0xf]
    %v137 = vld [vmem:[%s3 + $0x8] sm:$0xf]
    %v138 = vld [vmem:[%s3 + $0xc] sm:$0xf]
    %v139 = vld [vmem:[#allocation4] sm:$0x1]
    %v141 = vlaneseq
    %v142 = vshrl.u32 %v141, 7
    %v143 = vsub.s32 0, %v142
    %v144 = vrot.slane %v139, %v143
    %v150 = vunpack.c.l.b16 %v135
    %v151 = vunpack.c.l.b16 %v136
    %v152 = vunpack.c.l.b16 %v137
    %v153 = vunpack.c.l.b16 %v138
    %v154 = vpack.c.b16 %v151, %v150
    %v155 = vpack.c.b16 %v153, %v152
    %v159 = vsel %vm87, %v134, 0
    %161 = vmatprep.subr.bf16.mxu0 0
    %162 = vmatpush1.bf16.msra.mxu0 0
    %163 = vmatprep.subr.bf16.mxu0 0
    %164 = vmatpush1.bf16.msra.mxu0 0
    %165 = vmatprep.subr.bf16.mxu0 0
    %166 = vmatpush1.bf16.msra.mxu0 0
    %167 = vmatprep.subr.bf16.mxu0 0
    %168 = vmatpush1.bf16.msra.mxu0 0
    %169 = vmatprep.subr.bf16.mxu0 0
    %170 = vmatpush1.bf16.msra.mxu0 0
    %171 = vmatprep.subr.bf16.mxu0 0
    %172 = vmatpush1.bf16.msra.mxu0 0
    %173 = vmatprep.subr.bf16.mxu0 0
    %174 = vmatpush1.bf16.msra.mxu0 %v155
    %175 = vmatprep.subr.bf16.mxu0 0
    %176 = vmatpush1.bf16.msra.mxu0 %v154
    %177 = vmatprep.subr.bf16.mxu0 0
    %178 = vmatpush2.bf16.msra.mxu0 0
    %179 = vmatprep.subr.bf16.mxu0 0
    %180 = vmatpush2.bf16.msra.mxu0 0
    %181 = vmatprep.subr.bf16.mxu0 0
    %182 = vmatpush2.bf16.msra.mxu0 0
    %183 = vmatprep.subr.bf16.mxu0 0
    %184 = vmatpush2.bf16.msra.mxu0 0
    %185 = vmatprep.subr.bf16.mxu0 0
    %186 = vmatpush2.bf16.msra.mxu0 0
    %187 = vmatprep.subr.bf16.mxu0 0
    %188 = vmatpush2.bf16.msra.mxu0 0
    %189 = vmatprep.subr.bf16.mxu0 0
    %190 = vmatpush2.bf16.msra.mxu0 0
    %191 = vmatprep.subr.bf16.mxu0 0
    %192 = vmatpush2.bf16.msra.mxu0 0
    %193 = vmatprep.mubr.bf16.mxu0 0
    %194 = vmatmul.mubr.bf16.gmra.mxu0 %v159
    %v195 = vpop.f32.mrf.mxu0
    %v196 = vadd.f32 %v144, %v195
    %v197 = vpop.f32.mrf.mxu0
    %v198 = vpop.f32.mrf.mxu0
    %v199 = vadd.f32 %v144, %v198
    %v200 = vpop.f32.mrf.mxu0
    %201 = vdwg.mxu0
    %v202 = vmax.f32 %v196, 0.0
    %v203 = vmax.f32 %v199, 0.0
    %v204 = vpack.c.bf16 %v203, %v202
    %v205 = vld [vmem:[%s5] sm:$0xf]
    %v206 = vld [vmem:[%s5 + $0x4] sm:$0xf]
    %v207 = vld [vmem:[%s5 + $0x8] sm:$0xf]
    %v208 = vld [vmem:[%s5 + $0xc] sm:$0xf]
    %v209 = vld [vmem:[%s6] sm:$0x1]
    %v211 = vlaneseq
    %v212 = vshrl.u32 %v211, 7
    %v213 = vsub.s32 0, %v212
    %v214 = vrot.slane %v209, %v213
    %v220 = vunpack.c.l.b16 %v205
    %v221 = vunpack.c.l.b16 %v206
    %v222 = vunpack.c.l.b16 %v207
    %v223 = vunpack.c.l.b16 %v208
    %v224 = vpack.c.b16 %v221, %v220
    %v225 = vpack.c.b16 %v223, %v222
    %v229 = vsel %vm87, %v204, 0
    %231 = vmatprep.subr.bf16.mxu0 0
    %232 = vmatpush1.bf16.msra.mxu0 0
    %233 = vmatprep.subr.bf16.mxu0 0
    %234 = vmatpush1.bf16.msra.mxu0 0
    %235 = vmatprep.subr.bf16.mxu0 0
    %236 = vmatpush1.bf16.msra.mxu0 0
    %237 = vmatprep.subr.bf16.mxu0 0
    %238 = vmatpush1.bf16.msra.mxu0 0
    %239 = vmatprep.subr.bf16.mxu0 0
    %240 = vmatpush1.bf16.msra.mxu0 0
    %241 = vmatprep.subr.bf16.mxu0 0
    %242 = vmatpush1.bf16.msra.mxu0 0
    %243 = vmatprep.subr.bf16.mxu0 0
    %244 = vmatpush1.bf16.msra.mxu0 %v225
    %245 = vmatprep.subr.bf16.mxu0 0
    %246 = vmatpush1.bf16.msra.mxu0 %v224
    %247 = vmatprep.subr.bf16.mxu0 0
    %248 = vmatpush2.bf16.msra.mxu0 0
    %249 = vmatprep.subr.bf16.mxu0 0
    %250 = vmatpush2.bf16.msra.mxu0 0
    %251 = vmatprep.subr.bf16.mxu0 0
    %252 = vmatpush2.bf16.msra.mxu0 0
    %253 = vmatprep.subr.bf16.mxu0 0
    %254 = vmatpush2.bf16.msra.mxu0 0
    %255 = vmatprep.subr.bf16.mxu0 0
    %256 = vmatpush2.bf16.msra.mxu0 0
    %257 = vmatprep.subr.bf16.mxu0 0
    %258 = vmatpush2.bf16.msra.mxu0 0
    %259 = vmatprep.subr.bf16.mxu0 0
    %260 = vmatpush2.bf16.msra.mxu0 0
    %261 = vmatprep.subr.bf16.mxu0 0
    %262 = vmatpush2.bf16.msra.mxu0 0
    %263 = vmatprep.mubr.bf16.mxu0 0
    %264 = vmatmul.mubr.bf16.gmra.mxu0 %v229
    %v265 = vpop.f32.mrf.mxu0
    %v266 = vadd.f32 %v214, %v265
    %v267 = vpop.f32.mrf.mxu0
    %v268 = vpop.f32.mrf.mxu0
    %v269 = vadd.f32 %v214, %v268
    %v270 = vpop.f32.mrf.mxu0
    %271 = vdwg.mxu0
    %v272 = vmax.f32 %v266, 0.0
    %v273 = vmax.f32 %v269, 0.0
    %v274 = vpack.c.bf16 %v273, %v272
    %v275 = vld [vmem:[%s7] sm:$0xf]
    %v276 = vld [vmem:[%s7 + $0x4] sm:$0xf]
    %v277 = vld [vmem:[%s7 + $0x8] sm:$0xf]
    %v278 = vld [vmem:[%s7 + $0xc] sm:$0xf]
    %v279 = vld [vmem:[%s8] sm:$0x1]
    %v281 = vlaneseq
    %v282 = vshrl.u32 %v281, 7
    %v283 = vsub.s32 0, %v282
    %v284 = vrot.slane %v279, %v283
    %v290 = vunpack.c.l.b16 %v275
    %v291 = vunpack.c.l.b16 %v276
    %v292 = vunpack.c.l.b16 %v277
    %v293 = vunpack.c.l.b16 %v278
    %v294 = vpack.c.b16 %v291, %v290
    %v295 = vpack.c.b16 %v293, %v292
    %v299 = vsel %vm87, %v274, 0
    %301 = vmatprep.subr.bf16.mxu0 0
    %302 = vmatpush1.bf16.msra.mxu0 0
    %303 = vmatprep.subr.bf16.mxu0 0
    %304 = vmatpush1.bf16.msra.mxu0 0
    %305 = vmatprep.subr.bf16.mxu0 0
    %306 = vmatpush1.bf16.msra.mxu0 0
    %307 = vmatprep.subr.bf16.mxu0 0
    %308 = vmatpush1.bf16.msra.mxu0 0
    %309 = vmatprep.subr.bf16.mxu0 0
    %310 = vmatpush1.bf16.msra.mxu0 0
    %311 = vmatprep.subr.bf16.mxu0 0
    %312 = vmatpush1.bf16.msra.mxu0 0
    %313 = vmatprep.subr.bf16.mxu0 0
    %314 = vmatpush1.bf16.msra.mxu0 %v295
    %315 = vmatprep.subr.bf16.mxu0 0
    %316 = vmatpush1.bf16.msra.mxu0 %v294
    %317 = vmatprep.subr.bf16.mxu0 0
    %318 = vmatpush2.bf16.msra.mxu0 0
    %319 = vmatprep.subr.bf16.mxu0 0
    %320 = vmatpush2.bf16.msra.mxu0 0
    %321 = vmatprep.subr.bf16.mxu0 0
    %322 = vmatpush2.bf16.msra.mxu0 0
    %323 = vmatprep.subr.bf16.mxu0 0
    %324 = vmatpush2.bf16.msra.mxu0 0
    %325 = vmatprep.subr.bf16.mxu0 0
    %326 = vmatpush2.bf16.msra.mxu0 0
    %327 = vmatprep.subr.bf16.mxu0 0
    %328 = vmatpush2.bf16.msra.mxu0 0
    %329 = vmatprep.subr.bf16.mxu0 0
    %330 = vmatpush2.bf16.msra.mxu0 0
    %331 = vmatprep.subr.bf16.mxu0 0
    %332 = vmatpush2.bf16.msra.mxu0 0
    %333 = vmatprep.mubr.bf16.mxu0 0
    %334 = vmatmul.mubr.bf16.gmra.mxu0 %v299
    %v335 = vpop.f32.mrf.mxu0
    %v336 = vadd.f32 %v284, %v335
    %v337 = vpop.f32.mrf.mxu0
    %v338 = vpop.f32.mrf.mxu0
    %v339 = vadd.f32 %v284, %v338
    %v340 = vpop.f32.mrf.mxu0
    %341 = vdwg.mxu0
    %vm342 = vcmask 130048
    %343 = vst.msk [vmem:[%s9] sm:$0xff] %vm342, %v336
    %344 = vst.msk [vmem:[%s9 + $0x8] sm:$0xff] %vm342, %v339
    // Predicated region
    $region46: #{mlp_forward.1} parent=1 // pred_check
      _
    $region47: #{mlp_forward.1} parent=1 // pred_check_branch
      %346 = sbr.rel (0) target = $region49
    $region48: #{mlp_forward.1} parent=1 // pred_region
      _
    $region49: #{mlp_forward.1} parent=1 // pred_fallthru
      _
    // Predicated region
    $region50: #{mlp_forward.1} parent=1 // pred_check
      _
    $region51: #{mlp_forward.1} parent=1 // pred_check_branch
      %348 = sbr.rel (0) target = $region53
    $region52: #{mlp_forward.1} parent=1 // pred_region
      _
    $region53: #{mlp_forward.1} parent=1 // pred_fallthru
      _
    %349 = vsyncpa [#allocation3], 1
    %350 = vsyncpa [#allocation5], 1

</llo_original>
